<compile_context>
chip_gen: v5e
topology: v5e:2x2
jax: 0.10.0
libtpu: 0.0.40
codegen_flags: <defaults>
</compile_context>

<pallas_src>
import jax
import jax.numpy as jnp
from jax import lax
from jax.experimental import pallas as pl
from jax.experimental.pallas import tpu as pltpu


def bilstm_kernel(x_ref, wih_f_ref, whh_f_ref, b_f_ref,
                  wih_b_ref, b_b_ref, wout_ref, bout_ref,
                  out_ref, xp_ref):
    """Whole BiLSTM + linear head in one kernel invocation (no grid).

    Refs:
      x_ref     : (T*Bp, E)   f32  time-major embedded tokens, batch padded to 8
      wih_*_ref : (E, 4H)     f32  input->gates weights (fwd / bwd), gate order (i,f,g,o)
      whh_f_ref : (H, 4H)     f32  hidden->gates weights (fwd only; bwd is 1 step from 0)
      b_*_ref   : (1, 4H)     f32  combined gate bias (b_ih + b_hh)
      wout_ref  : (2H, 128)   f32  hidden2label weight, zero-padded to 128 lanes
      bout_ref  : (1, 128)    f32  hidden2label bias, zero-padded to 128 lanes
      out_ref   : (Bp, 128)   f32  logits (valid region [:B, :3])
      xp_ref    : (T*Bp, 4H)  f32  VMEM scratch: precomputed input projections
    """
    TB, _ = x_ref.shape
    Bp = out_ref.shape[0]
    T = TB // Bp
    H = whh_f_ref.shape[0]

    # Hoist the recurrent weight load out of the time loop (read once).
    whh_f = whh_f_ref[...]

    # Precompute x_t @ W_ih + b for every timestep with ONE MXU matmul,
    # off the serial critical path.
    xp_ref[...] = (jnp.dot(x_ref[...], wih_f_ref[...],
                           preferred_element_type=jnp.float32)
                   + b_f_ref[...])

    def cell_update(gates, c=None):
        # PyTorch gate order (i, f, g, o).  Transcendentals run on the full
        # 128-lane (Bp, 4H) value: 2 EUP ops per step instead of 4.
        sig = jax.nn.sigmoid(gates)
        tnh = jnp.tanh(gates)
        i = sig[:, 0 * H:1 * H]
        f = sig[:, 1 * H:2 * H]
        g = tnh[:, 2 * H:3 * H]
        o = sig[:, 3 * H:4 * H]
        c_new = i * g if c is None else f * c + i * g
        h_new = o * jnp.tanh(c_new)
        return h_new, c_new

    # Forward direction: serial recurrence, one small matmul per step,
    # state carried in vregs (not round-tripped through scratch).
    def fwd_body(t, carry):
        h, c = carry
        row = pl.multiple_of(t * Bp, 8)
        gates = (xp_ref[pl.ds(row, Bp), :]
                 + jnp.dot(h, whh_f, preferred_element_type=jnp.float32))
        return cell_update(gates, c)

    h0 = jnp.zeros((Bp, H), jnp.float32)
    c0 = jnp.zeros((Bp, H), jnp.float32)
    h_f, _ = lax.fori_loop(0, T, fwd_body, (h0, c0), unroll=True)

    # Backward direction: exactly one reverse-LSTM step on x[T-1] from zero
    # state, so the h @ W_hh term and f * c term vanish.
    x_last = x_ref[pl.ds((T - 1) * Bp, Bp), :]
    gates_b = (jnp.dot(x_last, wih_b_ref[...],
                       preferred_element_type=jnp.float32)
               + b_b_ref[...])
    h_b, _ = cell_update(gates_b, None)

    # hidden2label(lstm_out[-1]).  Split the dot over the two halves of wout to
    # avoid a lane-concat of two 32-lane values; output store is lane-dense.
    out_ref[...] = (
        jnp.dot(h_f, wout_ref[0:H, :], preferred_element_type=jnp.float32)
        + jnp.dot(h_b, wout_ref[H:2 * H, :], preferred_element_type=jnp.float32)
        + bout_ref[...])


def bilstm_classification_forward(sentence, params):
    """sentence: (B, T) int32 token ids.  Returns (B, 3) f32 logits."""
    # Glue: embedding lookup + permute(1, 0, 2), kept in plain JAX.
    # TODO(synk): at production sizes, fold the gather into the kernel via
    # scalar-prefetched ids + DMA row gather instead of materializing (B,T,E).
    emb = jnp.take(params["embedding"], sentence, axis=0)          # (B, T, E)
    emb = jnp.transpose(emb, (1, 0, 2)).astype(jnp.float32)        # (T, B, E)
    T, B, E = emb.shape
    H = params["whh_f"].shape[0]
    n_cls = params["wout"].shape[1]

    # Pad the batch (sublane) dim to a multiple of 8 so gate math / stores run
    # on fully-occupied sublanes; extra rows are discarded at the end.  Flatten
    # (T, Bp, E) -> (T*Bp, E) in XLA so the kernel never reshapes a value.
    B_pad = ((B + 7) // 8) * 8
    if B_pad != B:
        emb = jnp.pad(emb, ((0, 0), (0, B_pad - B), (0, 0)))
    emb_flat = emb.reshape(T * B_pad, E)

    # Pad the classifier head to 128 output lanes for an unmasked, lane-dense
    # output store; slice back to n_cls outside the kernel.
    wout_p = jnp.pad(params["wout"], ((0, 0), (0, 128 - n_cls)))
    bout_p = jnp.pad(params["bout"], ((0, 0), (0, 128 - n_cls)))

    vmem = pl.BlockSpec(memory_space=pltpu.MemorySpace.VMEM)
    out = pl.pallas_call(
        bilstm_kernel,
        out_shape=jax.ShapeDtypeStruct((B_pad, 128), jnp.float32),
        in_specs=[vmem] * 8,
        out_specs=vmem,
        scratch_shapes=[pltpu.VMEM((T * B_pad, 4 * H), jnp.float32)],
    )(emb_flat,
      params["wih_f"], params["whh_f"], params["b_f"],
      params["wih_b"], params["b_b"],
      wout_p, bout_p)
    return out[:B, :n_cls]


def init_params(key, vocab_size, embedding_dim, hidden_dim):
    """Deterministic synthetic parameters with the nn.Module's shapes."""
    keys = jax.random.split(key, 12)
    k = 1.0 / jnp.sqrt(hidden_dim).astype(jnp.float32)

    def u(kk, shape, bound):
        return jax.random.uniform(kk, shape, jnp.float32, -bound, bound)

    emb = jax.random.normal(keys[0], (vocab_size, embedding_dim), jnp.float32)
    emb = emb.at[0].set(0.0)  # padding_idx=0

    # PyTorch-native shapes: weight_ih (4H, E), weight_hh (4H, H), biases (4H,)
    wih_f = u(keys[1], (4 * hidden_dim, embedding_dim), k)
    whh_f = u(keys[2], (4 * hidden_dim, hidden_dim), k)
    bih_f = u(keys[3], (4 * hidden_dim,), k)
    bhh_f = u(keys[4], (4 * hidden_dim,), k)
    wih_b = u(keys[5], (4 * hidden_dim, embedding_dim), k)
    whh_b = u(keys[6], (4 * hidden_dim, hidden_dim), k)
    bih_b = u(keys[7], (4 * hidden_dim,), k)
    bhh_b = u(keys[8], (4 * hidden_dim,), k)

    ko = 1.0 / jnp.sqrt(2.0 * hidden_dim).astype(jnp.float32)
    wout = u(keys[9], (3, 2 * hidden_dim), ko)
    bout = u(keys[10], (3,), ko)

    return {
        "embedding": emb,
        "wih_f": wih_f.T, "whh_f": whh_f.T, "b_f": (bih_f + bhh_f)[None, :],
        "wih_b": wih_b.T, "whh_b": whh_b.T, "b_b": (bih_b + bhh_b)[None, :],
        "wout": wout.T, "bout": bout[None, :],
    }


def reference_forward(sentence, params):
    """Pure-JAX reference of the same forward pass (for a sanity check)."""
    emb = jnp.take(params["embedding"], sentence, axis=0)
    emb = jnp.transpose(emb, (1, 0, 2)).astype(jnp.float32)
    T, B, _ = emb.shape
    H = params["whh_f"].shape[0]

    def cell(x, h, c, wih, whh, b):
        gates = x @ wih + h @ whh + b
        i = jax.nn.sigmoid(gates[:, :H])
        f = jax.nn.sigmoid(gates[:, H:2 * H])
        g = jnp.tanh(gates[:, 2 * H:3 * H])
        o = jax.nn.sigmoid(gates[:, 3 * H:])
        c = f * c + i * g
        h = o * jnp.tanh(c)
        return h, c

    h = jnp.zeros((B, H), jnp.float32)
    c = jnp.zeros((B, H), jnp.float32)
    for t in range(T):
        h, c = cell(emb[t], h, c, params["wih_f"], params["whh_f"], params["b_f"])
    hb, _ = cell(emb[T - 1], jnp.zeros((B, H), jnp.float32),
                 jnp.zeros((B, H), jnp.float32),
                 params["wih_b"], params["whh_b"], params["b_b"])
    feat = jnp.concatenate([h, hb], axis=1)
    return feat @ params["wout"] + params["bout"]


if __name__ == "__main__":
    embedding_dim, hidden_dim, vocab_size = 16, 32, 50
    batch_size, seq_len = 2, 8

    key = jax.random.PRNGKey(0)
    pkey, skey = jax.random.split(key)
    params = init_params(pkey, vocab_size, embedding_dim, hidden_dim)
    sentence = jax.random.randint(skey, (batch_size, seq_len), 0, vocab_size,
                                  dtype=jnp.int32)

    out = bilstm_classification_forward(sentence, params)
    out = jax.block_until_ready(out)

    ref = reference_forward(sentence, params)
    assert out.shape == (batch_size, 3)
    assert jnp.allclose(out, ref, atol=1e-3, rtol=1e-3), (out, ref)
    print("KERNEL_OK")
</pallas_src>

<mosaic_0001>
module attributes {stable_mosaic.version = 11 : i64} {
  func.func @bilstm_kernel(%arg0: memref<64x16xf32, #tpu.memory_space<vmem>>, %arg1: memref<16x128xf32, #tpu.memory_space<vmem>>, %arg2: memref<32x128xf32, #tpu.memory_space<vmem>>, %arg3: memref<1x128xf32, #tpu.memory_space<vmem>>, %arg4: memref<16x128xf32, #tpu.memory_space<vmem>>, %arg5: memref<1x128xf32, #tpu.memory_space<vmem>>, %arg6: memref<64x128xf32, #tpu.memory_space<vmem>>, %arg7: memref<1x128xf32, #tpu.memory_space<vmem>>, %arg8: memref<8x128xf32, #tpu.memory_space<vmem>>, %arg9: memref<64x128xf32, #tpu.memory_space<vmem>>) attributes {dimension_semantics = [], scalar_prefetch = 0 : i64, scratch_operands = 1 : i64, tpu.core_type = #tpu.core_type<tc>} {
    %c0 = arith.constant 0 : index
    %c0_0 = arith.constant 0 : index
    %0 = vector.load %arg2[%c0, %c0_0] : memref<32x128xf32, #tpu.memory_space<vmem>>, vector<32x128xf32>
    %c0_1 = arith.constant 0 : index
    %c0_2 = arith.constant 0 : index
    %1 = vector.load %arg0[%c0_1, %c0_2] : memref<64x16xf32, #tpu.memory_space<vmem>>, vector<64x16xf32>
    %c0_3 = arith.constant 0 : index
    %c0_4 = arith.constant 0 : index
    %2 = vector.load %arg1[%c0_3, %c0_4] : memref<16x128xf32, #tpu.memory_space<vmem>>, vector<16x128xf32>
    %cst = arith.constant dense<0.000000e+00> : vector<64x128xf32>
    %3 = tpu.matmul %1, %2, %cst {dimension_numbers = #tpu.dot_dimension_numbers<[1], [0], [0], [1], [0, 0, 1, 1], [], []>} : vector<64x16xf32>, vector<16x128xf32>, vector<64x128xf32> -> vector<64x128xf32>
    %c0_5 = arith.constant 0 : index
    %c0_6 = arith.constant 0 : index
    %4 = vector.load %arg3[%c0_5, %c0_6] : memref<1x128xf32, #tpu.memory_space<vmem>>, vector<1x128xf32>
    %5 = vector.broadcast %4 : vector<1x128xf32> to vector<64x128xf32>
    %6 = arith.addf %3, %5 : vector<64x128xf32>
    %c0_7 = arith.constant 0 : index
    %c0_8 = arith.constant 0 : index
    %7 = vector.load %arg9[%c0_7, %c0_8] : memref<64x128xf32, #tpu.memory_space<vmem>>, vector<64x128xf32>
    tpu.vector_store %arg9[%c0_7, %c0_8], %6 {strides = array<i32>} : memref<64x128xf32, #tpu.memory_space<vmem>>, vector<64x128xf32>,
    %cst_9 = arith.constant 0.000000e+00 : f32
    %8 = vector.broadcast %cst_9 : f32 to vector<8x32xf32>
    %cst_10 = arith.constant 0.000000e+00 : f32
    %9 = vector.broadcast %cst_10 : f32 to vector<8x32xf32>
    %c0_i32 = arith.constant 0 : i32
    %c8_i32 = arith.constant 8 : i32
    %10 = arith.muli %c0_i32, %c8_i32 : i32
    %11 = tpu.assume_multiple %10, 8 : i32
    %12 = arith.index_cast %11 : i32 to index
    %c0_11 = arith.constant 0 : index
    %13 = vector.load %arg9[%12, %c0_11] : memref<64x128xf32, #tpu.memory_space<vmem>>, vector<8x128xf32>
    %cst_12 = arith.constant dense<0.000000e+00> : vector<8x128xf32>
    %14 = tpu.matmul %8, %0, %cst_12 {dimension_numbers = #tpu.dot_dimension_numbers<[1], [0], [0], [1], [0, 0, 1, 1], [], []>} : vector<8x32xf32>, vector<32x128xf32>, vector<8x128xf32> -> vector<8x128xf32>
    %15 = arith.addf %13, %14 : vector<8x128xf32>
    %16 = arith.negf %15 : vector<8x128xf32>
    %17 = math.exp %16 : vector<8x128xf32>
    %cst_13 = arith.constant 1.000000e+00 : f32
    %18 = vector.broadcast %cst_13 : f32 to vector<8x128xf32>
    %19 = arith.addf %18, %17 : vector<8x128xf32>
    %20 = arith.divf %18, %19 : vector<8x128xf32>
    %21 = math.tanh %15 : vector<8x128xf32>
    %22 = vector.extract_strided_slice %20 {offsets = [0, 0], sizes = [8, 32], strides = [1, 1]} : vector<8x128xf32> to vector<8x32xf32>
    %23 = vector.extract_strided_slice %20 {offsets = [0, 32], sizes = [8, 32], strides = [1, 1]} : vector<8x128xf32> to vector<8x32xf32>
    %24 = vector.extract_strided_slice %21 {offsets = [0, 64], sizes = [8, 32], strides = [1, 1]} : vector<8x128xf32> to vector<8x32xf32>
    %25 = vector.extract_strided_slice %20 {offsets = [0, 96], sizes = [8, 32], strides = [1, 1]} : vector<8x128xf32> to vector<8x32xf32>
    %26 = arith.mulf %23, %9 : vector<8x32xf32>
    %27 = arith.mulf %22, %24 : vector<8x32xf32>
    %28 = arith.addf %26, %27 : vector<8x32xf32>
    %29 = math.tanh %28 : vector<8x32xf32>
    %30 = arith.mulf %25, %29 : vector<8x32xf32>
    %c1_i32 = arith.constant 1 : i32
    %c8_i32_14 = arith.constant 8 : i32
    %31 = arith.muli %c1_i32, %c8_i32_14 : i32
    %32 = tpu.assume_multiple %31, 8 : i32
    %33 = arith.index_cast %32 : i32 to index
    %c0_15 = arith.constant 0 : index
    %34 = vector.load %arg9[%33, %c0_15] : memref<64x128xf32, #tpu.memory_space<vmem>>, vector<8x128xf32>
    %cst_16 = arith.constant dense<0.000000e+00> : vector<8x128xf32>
    %35 = tpu.matmul %30, %0, %cst_16 {dimension_numbers = #tpu.dot_dimension_numbers<[1], [0], [0], [1], [0, 0, 1, 1], [], []>} : vector<8x32xf32>, vector<32x128xf32>, vector<8x128xf32> -> vector<8x128xf32>
    %36 = arith.addf %34, %35 : vector<8x128xf32>
    %37 = arith.negf %36 : vector<8x128xf32>
    %38 = math.exp %37 : vector<8x128xf32>
    %cst_17 = arith.constant 1.000000e+00 : f32
    %39 = vector.broadcast %cst_17 : f32 to vector<8x128xf32>
    %40 = arith.addf %39, %38 : vector<8x128xf32>
    %41 = arith.divf %39, %40 : vector<8x128xf32>
    %42 = math.tanh %36 : vector<8x128xf32>
    %43 = vector.extract_strided_slice %41 {offsets = [0, 0], sizes = [8, 32], strides = [1, 1]} : vector<8x128xf32> to vector<8x32xf32>
    %44 = vector.extract_strided_slice %41 {offsets = [0, 32], sizes = [8, 32], strides = [1, 1]} : vector<8x128xf32> to vector<8x32xf32>
    %45 = vector.extract_strided_slice %42 {offsets = [0, 64], sizes = [8, 32], strides = [1, 1]} : vector<8x128xf32> to vector<8x32xf32>
    %46 = vector.extract_strided_slice %41 {offsets = [0, 96], sizes = [8, 32], strides = [1, 1]} : vector<8x128xf32> to vector<8x32xf32>
    %47 = arith.mulf %44, %28 : vector<8x32xf32>
    %48 = arith.mulf %43, %45 : vector<8x32xf32>
    %49 = arith.addf %47, %48 : vector<8x32xf32>
    %50 = math.tanh %49 : vector<8x32xf32>
    %51 = arith.mulf %46, %50 : vector<8x32xf32>
    %c2_i32 = arith.constant 2 : i32
    %c8_i32_18 = arith.constant 8 : i32
    %52 = arith.muli %c2_i32, %c8_i32_18 : i32
    %53 = tpu.assume_multiple %52, 8 : i32
    %54 = arith.index_cast %53 : i32 to index
    %c0_19 = arith.constant 0 : index
    %55 = vector.load %arg9[%54, %c0_19] : memref<64x128xf32, #tpu.memory_space<vmem>>, vector<8x128xf32>
    %cst_20 = arith.constant dense<0.000000e+00> : vector<8x128xf32>
    %56 = tpu.matmul %51, %0, %cst_20 {dimension_numbers = #tpu.dot_dimension_numbers<[1], [0], [0], [1], [0, 0, 1, 1], [], []>} : vector<8x32xf32>, vector<32x128xf32>, vector<8x128xf32> -> vector<8x128xf32>
    %57 = arith.addf %55, %56 : vector<8x128xf32>
    %58 = arith.negf %57 : vector<8x128xf32>
    %59 = math.exp %58 : vector<8x128xf32>
    %cst_21 = arith.constant 1.000000e+00 : f32
    %60 = vector.broadcast %cst_21 : f32 to vector<8x128xf32>
    %61 = arith.addf %60, %59 : vector<8x128xf32>
    %62 = arith.divf %60, %61 : vector<8x128xf32>
    %63 = math.tanh %57 : vector<8x128xf32>
    %64 = vector.extract_strided_slice %62 {offsets = [0, 0], sizes = [8, 32], strides = [1, 1]} : vector<8x128xf32> to vector<8x32xf32>
    %65 = vector.extract_strided_slice %62 {offsets = [0, 32], sizes = [8, 32], strides = [1, 1]} : vector<8x128xf32> to vector<8x32xf32>
    %66 = vector.extract_strided_slice %63 {offsets = [0, 64], sizes = [8, 32], strides = [1, 1]} : vector<8x128xf32> to vector<8x32xf32>
    %67 = vector.extract_strided_slice %62 {offsets = [0, 96], sizes = [8, 32], strides = [1, 1]} : vector<8x128xf32> to vector<8x32xf32>
    %68 = arith.mulf %65, %49 : vector<8x32xf32>
    %69 = arith.mulf %64, %66 : vector<8x32xf32>
    %70 = arith.addf %68, %69 : vector<8x32xf32>
    %71 = math.tanh %70 : vector<8x32xf32>
    %72 = arith.mulf %67, %71 : vector<8x32xf32>
    %c3_i32 = arith.constant 3 : i32
    %c8_i32_22 = arith.constant 8 : i32
    %73 = arith.muli %c3_i32, %c8_i32_22 : i32
    %74 = tpu.assume_multiple %73, 8 : i32
    %75 = arith.index_cast %74 : i32 to index
    %c0_23 = arith.constant 0 : index
    %76 = vector.load %arg9[%75, %c0_23] : memref<64x128xf32, #tpu.memory_space<vmem>>, vector<8x128xf32>
    %cst_24 = arith.constant dense<0.000000e+00> : vector<8x128xf32>
    %77 = tpu.matmul %72, %0, %cst_24 {dimension_numbers = #tpu.dot_dimension_numbers<[1], [0], [0], [1], [0, 0, 1, 1], [], []>} : vector<8x32xf32>, vector<32x128xf32>, vector<8x128xf32> -> vector<8x128xf32>
    %78 = arith.addf %76, %77 : vector<8x128xf32>
    %79 = arith.negf %78 : vector<8x128xf32>
    %80 = math.exp %79 : vector<8x128xf32>
    %cst_25 = arith.constant 1.000000e+00 : f32
    %81 = vector.broadcast %cst_25 : f32 to vector<8x128xf32>
    %82 = arith.addf %81, %80 : vector<8x128xf32>
    %83 = arith.divf %81, %82 : vector<8x128xf32>
    %84 = math.tanh %78 : vector<8x128xf32>
    %85 = vector.extract_strided_slice %83 {offsets = [0, 0], sizes = [8, 32], strides = [1, 1]} : vector<8x128xf32> to vector<8x32xf32>
    %86 = vector.extract_strided_slice %83 {offsets = [0, 32], sizes = [8, 32], strides = [1, 1]} : vector<8x128xf32> to vector<8x32xf32>
    %87 = vector.extract_strided_slice %84 {offsets = [0, 64], sizes = [8, 32], strides = [1, 1]} : vector<8x128xf32> to vector<8x32xf32>
    %88 = vector.extract_strided_slice %83 {offsets = [0, 96], sizes = [8, 32], strides = [1, 1]} : vector<8x128xf32> to vector<8x32xf32>
    %89 = arith.mulf %86, %70 : vector<8x32xf32>
    %90 = arith.mulf %85, %87 : vector<8x32xf32>
    %91 = arith.addf %89, %90 : vector<8x32xf32>
    %92 = math.tanh %91 : vector<8x32xf32>
    %93 = arith.mulf %88, %92 : vector<8x32xf32>
    %c4_i32 = arith.constant 4 : i32
    %c8_i32_26 = arith.constant 8 : i32
    %94 = arith.muli %c4_i32, %c8_i32_26 : i32
    %95 = tpu.assume_multiple %94, 8 : i32
    %96 = arith.index_cast %95 : i32 to index
    %c0_27 = arith.constant 0 : index
    %97 = vector.load %arg9[%96, %c0_27] : memref<64x128xf32, #tpu.memory_space<vmem>>, vector<8x128xf32>
    %cst_28 = arith.constant dense<0.000000e+00> : vector<8x128xf32>
    %98 = tpu.matmul %93, %0, %cst_28 {dimension_numbers = #tpu.dot_dimension_numbers<[1], [0], [0], [1], [0, 0, 1, 1], [], []>} : vector<8x32xf32>, vector<32x128xf32>, vector<8x128xf32> -> vector<8x128xf32>
    %99 = arith.addf %97, %98 : vector<8x128xf32>
    %100 = arith.negf %99 : vector<8x128xf32>
    %101 = math.exp %100 : vector<8x128xf32>
    %cst_29 = arith.constant 1.000000e+00 : f32
    %102 = vector.broadcast %cst_29 : f32 to vector<8x128xf32>
    %103 = arith.addf %102, %101 : vector<8x128xf32>
    %104 = arith.divf %102, %103 : vector<8x128xf32>
    %105 = math.tanh %99 : vector<8x128xf32>
    %106 = vector.extract_strided_slice %104 {offsets = [0, 0], sizes = [8, 32], strides = [1, 1]} : vector<8x128xf32> to vector<8x32xf32>
    %107 = vector.extract_strided_slice %104 {offsets = [0, 32], sizes = [8, 32], strides = [1, 1]} : vector<8x128xf32> to vector<8x32xf32>
    %108 = vector.extract_strided_slice %105 {offsets = [0, 64], sizes = [8, 32], strides = [1, 1]} : vector<8x128xf32> to vector<8x32xf32>
    %109 = vector.extract_strided_slice %104 {offsets = [0, 96], sizes = [8, 32], strides = [1, 1]} : vector<8x128xf32> to vector<8x32xf32>
    %110 = arith.mulf %107, %91 : vector<8x32xf32>
    %111 = arith.mulf %106, %108 : vector<8x32xf32>
    %112 = arith.addf %110, %111 : vector<8x32xf32>
    %113 = math.tanh %112 : vector<8x32xf32>
    %114 = arith.mulf %109, %113 : vector<8x32xf32>
    %c5_i32 = arith.constant 5 : i32
    %c8_i32_30 = arith.constant 8 : i32
    %115 = arith.muli %c5_i32, %c8_i32_30 : i32
    %116 = tpu.assume_multiple %115, 8 : i32
    %117 = arith.index_cast %116 : i32 to index
    %c0_31 = arith.constant 0 : index
    %118 = vector.load %arg9[%117, %c0_31] : memref<64x128xf32, #tpu.memory_space<vmem>>, vector<8x128xf32>
    %cst_32 = arith.constant dense<0.000000e+00> : vector<8x128xf32>
    %119 = tpu.matmul %114, %0, %cst_32 {dimension_numbers = #tpu.dot_dimension_numbers<[1], [0], [0], [1], [0, 0, 1, 1], [], []>} : vector<8x32xf32>, vector<32x128xf32>, vector<8x128xf32> -> vector<8x128xf32>
    %120 = arith.addf %118, %119 : vector<8x128xf32>
    %121 = arith.negf %120 : vector<8x128xf32>
    %122 = math.exp %121 : vector<8x128xf32>
    %cst_33 = arith.constant 1.000000e+00 : f32
    %123 = vector.broadcast %cst_33 : f32 to vector<8x128xf32>
    %124 = arith.addf %123, %122 : vector<8x128xf32>
    %125 = arith.divf %123, %124 : vector<8x128xf32>
    %126 = math.tanh %120 : vector<8x128xf32>
    %127 = vector.extract_strided_slice %125 {offsets = [0, 0], sizes = [8, 32], strides = [1, 1]} : vector<8x128xf32> to vector<8x32xf32>
    %128 = vector.extract_strided_slice %125 {offsets = [0, 32], sizes = [8, 32], strides = [1, 1]} : vector<8x128xf32> to vector<8x32xf32>
    %129 = vector.extract_strided_slice %126 {offsets = [0, 64], sizes = [8, 32], strides = [1, 1]} : vector<8x128xf32> to vector<8x32xf32>
    %130 = vector.extract_strided_slice %125 {offsets = [0, 96], sizes = [8, 32], strides = [1, 1]} : vector<8x128xf32> to vector<8x32xf32>
    %131 = arith.mulf %128, %112 : vector<8x32xf32>
    %132 = arith.mulf %127, %129 : vector<8x32xf32>
    %133 = arith.addf %131, %132 : vector<8x32xf32>
    %134 = math.tanh %133 : vector<8x32xf32>
    %135 = arith.mulf %130, %134 : vector<8x32xf32>
    %c6_i32 = arith.constant 6 : i32
    %c8_i32_34 = arith.constant 8 : i32
    %136 = arith.muli %c6_i32, %c8_i32_34 : i32
    %137 = tpu.assume_multiple %136, 8 : i32
    %138 = arith.index_cast %137 : i32 to index
    %c0_35 = arith.constant 0 : index
    %139 = vector.load %arg9[%138, %c0_35] : memref<64x128xf32, #tpu.memory_space<vmem>>, vector<8x128xf32>
    %cst_36 = arith.constant dense<0.000000e+00> : vector<8x128xf32>
    %140 = tpu.matmul %135, %0, %cst_36 {dimension_numbers = #tpu.dot_dimension_numbers<[1], [0], [0], [1], [0, 0, 1, 1], [], []>} : vector<8x32xf32>, vector<32x128xf32>, vector<8x128xf32> -> vector<8x128xf32>
    %141 = arith.addf %139, %140 : vector<8x128xf32>
    %142 = arith.negf %141 : vector<8x128xf32>
    %143 = math.exp %142 : vector<8x128xf32>
    %cst_37 = arith.constant 1.000000e+00 : f32
    %144 = vector.broadcast %cst_37 : f32 to vector<8x128xf32>
    %145 = arith.addf %144, %143 : vector<8x128xf32>
    %146 = arith.divf %144, %145 : vector<8x128xf32>
    %147 = math.tanh %141 : vector<8x128xf32>
    %148 = vector.extract_strided_slice %146 {offsets = [0, 0], sizes = [8, 32], strides = [1, 1]} : vector<8x128xf32> to vector<8x32xf32>
    %149 = vector.extract_strided_slice %146 {offsets = [0, 32], sizes = [8, 32], strides = [1, 1]} : vector<8x128xf32> to vector<8x32xf32>
    %150 = vector.extract_strided_slice %147 {offsets = [0, 64], sizes = [8, 32], strides = [1, 1]} : vector<8x128xf32> to vector<8x32xf32>
    %151 = vector.extract_strided_slice %146 {offsets = [0, 96], sizes = [8, 32], strides = [1, 1]} : vector<8x128xf32> to vector<8x32xf32>
    %152 = arith.mulf %149, %133 : vector<8x32xf32>
    %153 = arith.mulf %148, %150 : vector<8x32xf32>
    %154 = arith.addf %152, %153 : vector<8x32xf32>
    %155 = math.tanh %154 : vector<8x32xf32>
    %156 = arith.mulf %151, %155 : vector<8x32xf32>
    %c7_i32 = arith.constant 7 : i32
    %c8_i32_38 = arith.constant 8 : i32
    %157 = arith.muli %c7_i32, %c8_i32_38 : i32
    %158 = tpu.assume_multiple %157, 8 : i32
    %159 = arith.index_cast %158 : i32 to index
    %c0_39 = arith.constant 0 : index
    %160 = vector.load %arg9[%159, %c0_39] : memref<64x128xf32, #tpu.memory_space<vmem>>, vector<8x128xf32>
    %cst_40 = arith.constant dense<0.000000e+00> : vector<8x128xf32>
    %161 = tpu.matmul %156, %0, %cst_40 {dimension_numbers = #tpu.dot_dimension_numbers<[1], [0], [0], [1], [0, 0, 1, 1], [], []>} : vector<8x32xf32>, vector<32x128xf32>, vector<8x128xf32> -> vector<8x128xf32>
    %162 = arith.addf %160, %161 : vector<8x128xf32>
    %163 = arith.negf %162 : vector<8x128xf32>
    %164 = math.exp %163 : vector<8x128xf32>
    %cst_41 = arith.constant 1.000000e+00 : f32
    %165 = vector.broadcast %cst_41 : f32 to vector<8x128xf32>
    %166 = arith.addf %165, %164 : vector<8x128xf32>
    %167 = arith.divf %165, %166 : vector<8x128xf32>
    %168 = math.tanh %162 : vector<8x128xf32>
    %169 = vector.extract_strided_slice %167 {offsets = [0, 0], sizes = [8, 32], strides = [1, 1]} : vector<8x128xf32> to vector<8x32xf32>
    %170 = vector.extract_strided_slice %167 {offsets = [0, 32], sizes = [8, 32], strides = [1, 1]} : vector<8x128xf32> to vector<8x32xf32>
    %171 = vector.extract_strided_slice %168 {offsets = [0, 64], sizes = [8, 32], strides = [1, 1]} : vector<8x128xf32> to vector<8x32xf32>
    %172 = vector.extract_strided_slice %167 {offsets = [0, 96], sizes = [8, 32], strides = [1, 1]} : vector<8x128xf32> to vector<8x32xf32>
    %173 = arith.mulf %170, %154 : vector<8x32xf32>
    %174 = arith.mulf %169, %171 : vector<8x32xf32>
    %175 = arith.addf %173, %174 : vector<8x32xf32>
    %176 = math.tanh %175 : vector<8x32xf32>
    %177 = arith.mulf %172, %176 : vector<8x32xf32>
    %c8_i32_42 = arith.constant 8 : i32
    %c56 = arith.constant 56 : index
    %c0_43 = arith.constant 0 : index
    %178 = vector.load %arg0[%c56, %c0_43] : memref<64x16xf32, #tpu.memory_space<vmem>>, vector<8x16xf32>
    %c0_44 = arith.constant 0 : index
    %c0_45 = arith.constant 0 : index
    %179 = vector.load %arg4[%c0_44, %c0_45] : memref<16x128xf32, #tpu.memory_space<vmem>>, vector<16x128xf32>
    %cst_46 = arith.constant dense<0.000000e+00> : vector<8x128xf32>
    %180 = tpu.matmul %178, %179, %cst_46 {dimension_numbers = #tpu.dot_dimension_numbers<[1], [0], [0], [1], [0, 0, 1, 1], [], []>} : vector<8x16xf32>, vector<16x128xf32>, vector<8x128xf32> -> vector<8x128xf32>
    %c0_47 = arith.constant 0 : index
    %c0_48 = arith.constant 0 : index
    %181 = vector.load %arg5[%c0_47, %c0_48] : memref<1x128xf32, #tpu.memory_space<vmem>>, vector<1x128xf32>
    %182 = vector.broadcast %181 : vector<1x128xf32> to vector<8x128xf32>
    %183 = arith.addf %180, %182 : vector<8x128xf32>
    %184 = arith.negf %183 : vector<8x128xf32>
    %185 = math.exp %184 : vector<8x128xf32>
    %cst_49 = arith.constant 1.000000e+00 : f32
    %186 = vector.broadcast %cst_49 : f32 to vector<8x128xf32>
    %187 = arith.addf %186, %185 : vector<8x128xf32>
    %188 = arith.divf %186, %187 : vector<8x128xf32>
    %189 = math.tanh %183 : vector<8x128xf32>
    %190 = vector.extract_strided_slice %188 {offsets = [0, 0], sizes = [8, 32], strides = [1, 1]} : vector<8x128xf32> to vector<8x32xf32>
    %191 = vector.extract_strided_slice %189 {offsets = [0, 64], sizes = [8, 32], strides = [1, 1]} : vector<8x128xf32> to vector<8x32xf32>
    %192 = vector.extract_strided_slice %188 {offsets = [0, 96], sizes = [8, 32], strides = [1, 1]} : vector<8x128xf32> to vector<8x32xf32>
    %193 = arith.mulf %190, %191 : vector<8x32xf32>
    %194 = math.tanh %193 : vector<8x32xf32>
    %195 = arith.mulf %192, %194 : vector<8x32xf32>
    %c0_50 = arith.constant 0 : index
    %c0_51 = arith.constant 0 : index
    %196 = vector.load %arg6[%c0_50, %c0_51] : memref<64x128xf32, #tpu.memory_space<vmem>>, vector<32x128xf32>
    %cst_52 = arith.constant dense<0.000000e+00> : vector<8x128xf32>
    %197 = tpu.matmul %177, %196, %cst_52 {dimension_numbers = #tpu.dot_dimension_numbers<[1], [0], [0], [1], [0, 0, 1, 1], [], []>} : vector<8x32xf32>, vector<32x128xf32>, vector<8x128xf32> -> vector<8x128xf32>
    %c32 = arith.constant 32 : index
    %c0_53 = arith.constant 0 : index
    %198 = vector.load %arg6[%c32, %c0_53] : memref<64x128xf32, #tpu.memory_space<vmem>>, vector<32x128xf32>
    %cst_54 = arith.constant dense<0.000000e+00> : vector<8x128xf32>
    %199 = tpu.matmul %195, %198, %cst_54 {dimension_numbers = #tpu.dot_dimension_numbers<[1], [0], [0], [1], [0, 0, 1, 1], [], []>} : vector<8x32xf32>, vector<32x128xf32>, vector<8x128xf32> -> vector<8x128xf32>
    %200 = arith.addf %197, %199 : vector<8x128xf32>
    %c0_55 = arith.constant 0 : index
    %c0_56 = arith.constant 0 : index
    %201 = vector.load %arg7[%c0_55, %c0_56] : memref<1x128xf32, #tpu.memory_space<vmem>>, vector<1x128xf32>
    %202 = vector.broadcast %201 : vector<1x128xf32> to vector<8x128xf32>
    %203 = arith.addf %200, %202 : vector<8x128xf32>
    %c0_57 = arith.constant 0 : index
    %c0_58 = arith.constant 0 : index
    %204 = vector.load %arg8[%c0_57, %c0_58] : memref<8x128xf32, #tpu.memory_space<vmem>>, vector<8x128xf32>
    tpu.vector_store %arg8[%c0_57, %c0_58], %203 {strides = array<i32>} : memref<8x128xf32, #tpu.memory_space<vmem>>, vector<8x128xf32>,
    return
  }
}

</mosaic_0001>

<llo_original>
// kernel: tpu_custom_call.1
$region0: #{tpu_custom_call.1}
  #allocation0 [shape = 'u32[]', space=smem, size = 0x4, offset = 0x4, fixed_abs, tag = 'smem constant byte address 0x4 - core index']
  #allocation1 [shape = 'u32[72,128]{1,0:T(1,128)}', space=vmem, size = 0x9000, scoped, tag = 'internal scratch']
  #allocation2 [shape = 'f32[64,128]{1,0:T(8,128)}', space=vmem, size = 0x8000, scoped, tag = 'scratch operand']
  %s0 = inlined_call_operand.vmem [shape: f32[64,16], index: 0, kind: input, shape index: {}]
  %s1 = inlined_call_operand.vmem [shape: f32[16,128], index: 1, kind: input, shape index: {}]
  %s2 = inlined_call_operand.hbm [shape: f32[32,128], index: 2, kind: input, shape index: {}]
  %s3 = inlined_call_operand.vmem [shape: f32[1,128], index: 3, kind: input, shape index: {}]
  %s4 = inlined_call_operand.hbm [shape: f32[16,128], index: 4, kind: input, shape index: {}]
  %s5 = inlined_call_operand.vmem [shape: f32[1,128], index: 5, kind: input, shape index: {}]
  %s6 = inlined_call_operand.vmem [shape: f32[64,128], index: 6, kind: input, shape index: {}]
  %s7 = inlined_call_operand.vmem [shape: f32[1,128], index: 7, kind: input, shape index: {}]
  %s8 = inlined_call_operand.hbm [shape: f32[8,128], index: 8, kind: output, shape index: {}]
  %s9 = sld [smem:[#allocation0]]
  $region50: #{tpu_custom_call.1} parent=0
    _
  %s11 = ssub.s32 1, %s9
  %s12 = scalar_select 0, %s11, %s9
  $region1: #{tpu_custom_call.1} parent=0
    #allocation3 [shape = 'u8[16384]{0}', space=vmem, size = 0x4000, scoped, tag = 'input window, operand 2, single buffered']
    #allocation4 [shape = 's32[1]{0}', space=sflag, size = 0x4, scoped, tag = 'scoped memory for tpu_custom_call.1']
    #allocation5 [shape = 's32[1]{0}', space=sflag, size = 0x4, scoped, tag = 'scoped memory for tpu_custom_call.1']
    #allocation6 [shape = 'u8[8192]{0}', space=vmem, size = 0x2000, scoped, tag = 'input window, operand 4, single buffered']
    #allocation7 [shape = 's32[1]{0}', space=sflag, size = 0x4, scoped, tag = 'scoped memory for tpu_custom_call.1']
    #allocation8 [shape = 'u8[4096]{0}', space=vmem, size = 0x1000, scoped, tag = 'output window, operand 0, single buffered']
    %13 = vsyncpa [#allocation4], 0
    %14 = vsyncpa [#allocation7], 0
    %15 = vsyncpa [#allocation5], 0
    // Predicated region
    $region2: #{tpu_custom_call.1} parent=1 // pred_check
      _
    $region3: #{tpu_custom_call.1} parent=1 // pred_check_branch
      %17 = sbr.rel (0) target = $region5
    $region4: #{tpu_custom_call.1} parent=1 // pred_region
      _
    $region5: #{tpu_custom_call.1} parent=1 // pred_fallthru
      _
    // Predicated region
    $region6: #{tpu_custom_call.1} parent=1 // pred_check
      _
    $region7: #{tpu_custom_call.1} parent=1 // pred_check_branch
      %19 = sbr.rel (0) target = $region9
    $region8: #{tpu_custom_call.1} parent=1 // pred_region
      _
    $region9: #{tpu_custom_call.1} parent=1 // pred_fallthru
      _
    // Predicated region
    $region10: #{tpu_custom_call.1} parent=1 // pred_check
      _
    $region11: #{tpu_custom_call.1} parent=1 // pred_check_branch
      %21 = sbr.rel (0) target = $region13
    $region12: #{tpu_custom_call.1} parent=1 // pred_region
      %23 = vsyncadd [#allocation4], 0
      %s24 = sshll.u32 %s2, 4
      %s25 = int_to_ptr.hbm [resolvable:$true] %s24
      %s26 = sshll.u32 [#allocation3], 4
      %s27 = int_to_ptr.vmem [resolvable:$true] %s26
      %32 = dma.hbm_to_vmem [thread:$0]  %s25, 512, %s27, [#allocation4], 128, 128, 8
    $region13: #{tpu_custom_call.1} parent=1 // pred_fallthru
      _
    // Predicated region
    $region14: #{tpu_custom_call.1} parent=1 // pred_check
      _
    $region15: #{tpu_custom_call.1} parent=1 // pred_check_branch
      %34 = sbr.rel (0) target = $region17
    $region16: #{tpu_custom_call.1} parent=1 // pred_region
      _
    $region17: #{tpu_custom_call.1} parent=1 // pred_fallthru
      _
    // Predicated region
    $region18: #{tpu_custom_call.1} parent=1 // pred_check
      _
    $region19: #{tpu_custom_call.1} parent=1 // pred_check_branch
      %36 = sbr.rel (0) target = $region21
    $region20: #{tpu_custom_call.1} parent=1 // pred_region
      %38 = vsyncadd [#allocation7], 0
      %s39 = sshll.u32 %s4, 4
      %s40 = int_to_ptr.hbm [resolvable:$true] %s39
      %s41 = sshll.u32 [#allocation6], 4
      %s42 = int_to_ptr.vmem [resolvable:$true] %s41
      %47 = dma.hbm_to_vmem [thread:$0]  %s40, 256, %s42, [#allocation7], 128, 128, 8
    $region21: #{tpu_custom_call.1} parent=1 // pred_fallthru
      _
    // Predicated region
    $region22: #{tpu_custom_call.1} parent=1 // pred_check
      _
    $region23: #{tpu_custom_call.1} parent=1 // pred_check_branch
      %49 = sbr.rel (0) target = $region25
    $region24: #{tpu_custom_call.1} parent=1 // pred_region
      _
    $region25: #{tpu_custom_call.1} parent=1 // pred_fallthru
      _
    // Predicated region
    $region26: #{tpu_custom_call.1} parent=1 // pred_check
      _
    $region27: #{tpu_custom_call.1} parent=1 // pred_check_branch
      %51 = sbr.rel (0) target = $region29
    $region28: #{tpu_custom_call.1} parent=1 // pred_region
      _
    $region29: #{tpu_custom_call.1} parent=1 // pred_fallthru
      _
    // Predicated region
    $region30: #{tpu_custom_call.1} parent=1 // pred_check
      _
    $region31: #{tpu_custom_call.1} parent=1 // pred_check_branch
      %53 = sbr.rel (0) target = $region33
    $region32: #{tpu_custom_call.1} parent=1 // pred_region
      _
    $region33: #{tpu_custom_call.1} parent=1 // pred_fallthru
      _
    // Predicated region
    $region34: #{tpu_custom_call.1} parent=1 // pred_check
      _
    $region35: #{tpu_custom_call.1} parent=1 // pred_check_branch
      %55 = sbr.rel (0) target = $region37
    $region36: #{tpu_custom_call.1} parent=1 // pred_region
      %57 = dma.done [#allocation4], 512
    $region37: #{tpu_custom_call.1} parent=1 // pred_fallthru
      _
    // Predicated region
    $region38: #{tpu_custom_call.1} parent=1 // pred_check
      _
    $region39: #{tpu_custom_call.1} parent=1 // pred_check_branch
      %59 = sbr.rel (0) target = $region41
    $region40: #{tpu_custom_call.1} parent=1 // pred_region
      %61 = dma.done [#allocation7], 256
    $region41: #{tpu_custom_call.1} parent=1 // pred_fallthru
      _
    %v62 = vld [vmem:[#allocation3] sm:$0xff]
    %v63 = vld [vmem:[#allocation3 + $0x8] sm:$0xff]
    %v64 = vld [vmem:[#allocation3 + $0x10] sm:$0xff]
    %v65 = vld [vmem:[#allocation3 + $0x18] sm:$0xff]
    %v66 = vld [vmem:[%s0] sm:$0xff]
    %v67 = vld [vmem:[%s0 + $0x8] sm:$0xff]
    %v68 = vld [vmem:[%s0 + $0x10] sm:$0xff]
    %v69 = vld [vmem:[%s0 + $0x18] sm:$0xff]
    %v70 = vld [vmem:[%s0 + $0x20] sm:$0xff]
    %v71 = vld [vmem:[%s0 + $0x28] sm:$0xff]
    %v72 = vld [vmem:[%s0 + $0x30] sm:$0xff]
    %v73 = vld [vmem:[%s0 + $0x38] sm:$0xff]
    %v74 = vld [vmem:[%s1] sm:$0xff]
    %v75 = vld [vmem:[%s1 + $0x8] sm:$0xff]
    %v76 = vld [vmem:[%s3] sm:$0x1]
    %v78 = vperm.slane %v76, 0
    %vm80 = vcmask 130048
    %v82 = vsel %vm80, %v66, 0
    %v85 = vsel %vm80, %v67, 0
    %v88 = vsel %vm80, %v68, 0
    %v91 = vsel %vm80, %v69, 0
    %v94 = vsel %vm80, %v70, 0
    %v97 = vsel %vm80, %v71, 0
    %v100 = vsel %vm80, %v72, 0
    %v103 = vsel %vm80, %v73, 0
    %105 = vmatpush.msra.mxu0 0.0
    %106 = vmatpush.msra.mxu0 0.0
    %107 = vmatpush.msra.mxu0 0.0
    %108 = vmatpush.msra.mxu0 0.0
    %109 = vmatpush.msra.mxu0 0.0
    %110 = vmatpush.msra.mxu0 0.0
    %111 = vmatpush.msra.mxu0 0.0
    %112 = vmatpush.msra.mxu0 0.0
    %113 = vmatpush.msra.mxu0 0.0
    %114 = vmatpush.msra.mxu0 0.0
    %115 = vmatpush.msra.mxu0 0.0
    %116 = vmatpush.msra.mxu0 0.0
    %117 = vmatpush.msra.mxu0 0.0
    %118 = vmatpush.msra.mxu0 0.0
    %119 = vmatpush.msra.mxu0 %v75
    %120 = vmatpush.msra.mxu0 %v74
    %121 = vmatmul.f32.gmra.mxu0 %v82
    %v122 = vpop.f32.mrf.mxu0
    %v123 = vadd.f32 %v78, %v122
    %124 = vmatmul.f32.gmra.mxu0 %v85
    %v125 = vpop.f32.mrf.mxu0
    %v126 = vadd.f32 %v78, %v125
    %127 = vmatmul.f32.gmra.mxu0 %v88
    %v128 = vpop.f32.mrf.mxu0
    %v129 = vadd.f32 %v78, %v128
    %130 = vmatmul.f32.gmra.mxu0 %v91
    %v131 = vpop.f32.mrf.mxu0
    %v132 = vadd.f32 %v78, %v131
    %133 = vmatmul.f32.gmra.mxu0 %v94
    %v134 = vpop.f32.mrf.mxu0
    %v135 = vadd.f32 %v78, %v134
    %136 = vmatmul.f32.gmra.mxu0 %v97
    %v137 = vpop.f32.mrf.mxu0
    %v138 = vadd.f32 %v78, %v137
    %139 = vmatmul.f32.gmra.mxu0 %v100
    %v140 = vpop.f32.mrf.mxu0
    %v141 = vadd.f32 %v78, %v140
    %142 = vmatmul.f32.gmra.mxu0 %v103
    %v143 = vpop.f32.mrf.mxu0
    %v144 = vadd.f32 %v78, %v143
    %145 = vdwg.mxu0
    %146 = vst [vmem:[#allocation2] sm:$0xff] %v123
    %147 = vst [vmem:[#allocation2 + $0x8] sm:$0xff] %v126
    %148 = vst [vmem:[#allocation2 + $0x10] sm:$0xff] %v129
    %149 = vst [vmem:[#allocation2 + $0x18] sm:$0xff] %v132
    %150 = vst [vmem:[#allocation2 + $0x20] sm:$0xff] %v135
    %151 = vst [vmem:[#allocation2 + $0x28] sm:$0xff] %v138
    %152 = vst [vmem:[#allocation2 + $0x30] sm:$0xff] %v141
    %153 = vst [vmem:[#allocation2 + $0x38] sm:$0xff] %v144
    %v154 = vld [vmem:[#allocation2] sm:$0xff]
    %vm155 = vcmask 261120
    %v157 = vsel %vm155, 0.0, 0
    %159 = vmatpush.msra.mxu0 0.0
    %160 = vmatpush.msra.mxu0 0.0
    %161 = vmatpush.msra.mxu0 0.0
    %162 = vmatpush.msra.mxu0 0.0
    %163 = vmatpush.msra.mxu0 0.0
    %164 = vmatpush.msra.mxu0 0.0
    %165 = vmatpush.msra.mxu0 0.0
    %166 = vmatpush.msra.mxu0 0.0
    %167 = vmatpush.msra.mxu0 0.0
    %168 = vmatpush.msra.mxu0 0.0
    %169 = vmatpush.msra.mxu0 0.0
    %170 = vmatpush.msra.mxu0 0.0
    %171 = vmatpush.msra.mxu0 %v65
    %172 = vmatpush.msra.mxu0 %v64
    %173 = vmatpush.msra.mxu0 %v63
    %174 = vmatpush.msra.mxu0 %v62
    %175 = vmatmul.f32.gmra.mxu0 %v157
    %v176 = vpop.f32.mrf.mxu0
    %v177 = vadd.f32 0.0, %v176
    %178 = vdwg.mxu0
    %v179 = vadd.f32 %v154, %v177
    %v180 = vxor.u32 %v179, 2147483648
    %v181 = vmul.f32 %v180, 1.442695
    %v182 = vpow.pop %v181
    %v183 = vadd.f32 %v182, 1.0
    %v184 = vrcp.pop %v183
    %v185 = vmul.f32 %v183, %v184
    %v186 = vsub.f32 1.0, %v185
    %v187 = vmul.f32 %v184, %v186
    %v188 = vadd.f32 %v184, %v187
    %vm189 = vweird.f32 %v183
    %vm190 = vweird.f32 %v184
    %vm191 = vmor %vm189, %vm190
    %v192 = vsel %vm191, %v184, %v188
    %v193 = vand.u32 2147483647, %v183
    %vm194 = vcmp.eq.f32.partialorder %v193, 8.507059e+37
    %v195 = vand.u32 %v183, 2147483648
    %v196 = vor.u32 1.1754944e-38, %v195
    %v197 = vsel %vm194, %v196, %v192
    %v198 = vmul.f32 1.0, %v197
    %v199 = vtanh.pop %v179
    %v200 = vmul.f32 %v198, 0.0
    %202 = vrot.lane.b32.xlu0 %v199, 64
    %v203 = vpop.permute.xlu0 %202
    %v205 = vmul.f32 %v198, %v203
    %207 = vrot.lane.b32.xlu0 %v205, 32
    %v208 = vpop.permute.xlu0 %207
    %v210 = vadd.f32 %v200, %v208
    %v211 = vtanh.pop %v210
    %213 = vrot.lane.b32.xlu0 %v211, 64
    %v214 = vpop.permute.xlu0 %213
    %v216 = vmul.f32 %v198, %v214
    %s217 = scalar_lea.vmem [#allocation2], 8
    %v218 = vld [vmem:[%s217] sm:$0xff]
    %220 = vrot.lane.b32.xlu0 %v216, 32
    %v221 = vpop.permute.xlu0 %220
    %v222 = vsel %vm155, %v221, 0
    %224 = vmatpush.msra.mxu0 0.0
    %225 = vmatpush.msra.mxu0 0.0
    %226 = vmatpush.msra.mxu0 0.0
    %227 = vmatpush.msra.mxu0 0.0
    %228 = vmatpush.msra.mxu0 0.0
    %229 = vmatpush.msra.mxu0 0.0
    %230 = vmatpush.msra.mxu0 0.0
    %231 = vmatpush.msra.mxu0 0.0
    %232 = vmatpush.msra.mxu0 0.0
    %233 = vmatpush.msra.mxu0 0.0
    %234 = vmatpush.msra.mxu0 0.0
    %235 = vmatpush.msra.mxu0 0.0
    %236 = vmatpush.msra.mxu0 %v65
    %237 = vmatpush.msra.mxu0 %v64
    %238 = vmatpush.msra.mxu0 %v63
    %239 = vmatpush.msra.mxu0 %v62
    %240 = vmatmul.f32.gmra.mxu0 %v222
    %v241 = vpop.f32.mrf.mxu0
    %v242 = vadd.f32 0.0, %v241
    %243 = vdwg.mxu0
    %v244 = vadd.f32 %v218, %v242
    %v245 = vxor.u32 %v244, 2147483648
    %v246 = vmul.f32 %v245, 1.442695
    %v247 = vpow.pop %v246
    %v248 = vadd.f32 %v247, 1.0
    %v249 = vrcp.pop %v248
    %v250 = vmul.f32 %v248, %v249
    %v251 = vsub.f32 1.0, %v250
    %v252 = vmul.f32 %v249, %v251
    %v253 = vadd.f32 %v249, %v252
    %vm254 = vweird.f32 %v248
    %vm255 = vweird.f32 %v249
    %vm256 = vmor %vm254, %vm255
    %v257 = vsel %vm256, %v249, %v253
    %v258 = vand.u32 2147483647, %v248
    %vm259 = vcmp.eq.f32.partialorder %v258, 8.507059e+37
    %v260 = vand.u32 %v248, 2147483648
    %v261 = vor.u32 1.1754944e-38, %v260
    %v262 = vsel %vm259, %v261, %v257
    %v263 = vmul.f32 1.0, %v262
    %v264 = vtanh.pop %v244
    %v265 = vmul.f32 %v263, %v210
    %267 = vrot.lane.b32.xlu0 %v264, 64
    %v268 = vpop.permute.xlu0 %267
    %v270 = vmul.f32 %v263, %v268
    %272 = vrot.lane.b32.xlu0 %v270, 32
    %v273 = vpop.permute.xlu0 %272
    %v275 = vadd.f32 %v265, %v273
    %v276 = vtanh.pop %v275
    %278 = vrot.lane.b32.xlu0 %v276, 64
    %v279 = vpop.permute.xlu0 %278
    %v281 = vmul.f32 %v263, %v279
    %s282 = scalar_lea.vmem [#allocation2], 16
    %v283 = vld [vmem:[%s282] sm:$0xff]
    %285 = vrot.lane.b32.xlu0 %v281, 32
    %v286 = vpop.permute.xlu0 %285
    %v287 = vsel %vm155, %v286, 0
    %289 = vmatpush.msra.mxu0 0.0
    %290 = vmatpush.msra.mxu0 0.0
    %291 = vmatpush.msra.mxu0 0.0
    %292 = vmatpush.msra.mxu0 0.0
    %293 = vmatpush.msra.mxu0 0.0
    %294 = vmatpush.msra.mxu0 0.0
    %295 = vmatpush.msra.mxu0 0.0
    %296 = vmatpush.msra.mxu0 0.0
    %297 = vmatpush.msra.mxu0 0.0
    %298 = vmatpush.msra.mxu0 0.0
    %299 = vmatpush.msra.mxu0 0.0
    %300 = vmatpush.msra.mxu0 0.0
    %301 = vmatpush.msra.mxu0 %v65
    %302 = vmatpush.msra.mxu0 %v64
    %303 = vmatpush.msra.mxu0 %v63
    %304 = vmatpush.msra.mxu0 %v62
    %305 = vmatmul.f32.gmra.mxu0 %v287
    %v306 = vpop.f32.mrf.mxu0
    %v307 = vadd.f32 0.0, %v306
    %308 = vdwg.mxu0
    %v309 = vadd.f32 %v283, %v307
    %v310 = vxor.u32 %v309, 2147483648
    %v311 = vmul.f32 %v310, 1.442695
    %v312 = vpow.pop %v311
    %v313 = vadd.f32 %v312, 1.0
    %v314 = vrcp.pop %v313
    %v315 = vmul.f32 %v313, %v314
    %v316 = vsub.f32 1.0, %v315
    %v317 = vmul.f32 %v314, %v316
    %v318 = vadd.f32 %v314, %v317
    %vm319 = vweird.f32 %v313
    %vm320 = vweird.f32 %v314
    %vm321 = vmor %vm319, %vm320
    %v322 = vsel %vm321, %v314, %v318
    %v323 = vand.u32 2147483647, %v313
    %vm324 = vcmp.eq.f32.partialorder %v323, 8.507059e+37
    %v325 = vand.u32 %v313, 2147483648
    %v326 = vor.u32 1.1754944e-38, %v325
    %v327 = vsel %vm324, %v326, %v322
    %v328 = vmul.f32 1.0, %v327
    %v329 = vtanh.pop %v309
    %v330 = vmul.f32 %v328, %v275
    %332 = vrot.lane.b32.xlu0 %v329, 64
    %v333 = vpop.permute.xlu0 %332
    %v335 = vmul.f32 %v328, %v333
    %337 = vrot.lane.b32.xlu0 %v335, 32
    %v338 = vpop.permute.xlu0 %337
    %v340 = vadd.f32 %v330, %v338
    %v341 = vtanh.pop %v340
    %343 = vrot.lane.b32.xlu0 %v341, 64
    %v344 = vpop.permute.xlu0 %343
    %v346 = vmul.f32 %v328, %v344
    %s347 = scalar_lea.vmem [#allocation2], 24
    %v348 = vld [vmem:[%s347] sm:$0xff]
    %350 = vrot.lane.b32.xlu0 %v346, 32
    %v351 = vpop.permute.xlu0 %350
    %v352 = vsel %vm155, %v351, 0
    %354 = vmatpush.msra.mxu0 0.0
    %355 = vmatpush.msra.mxu0 0.0
    %356 = vmatpush.msra.mxu0 0.0
    %357 = vmatpush.msra.mxu0 0.0
    %358 = vmatpush.msra.mxu0 0.0
    %359 = vmatpush.msra.mxu0 0.0
    %360 = vmatpush.msra.mxu0 0.0
    %361 = vmatpush.msra.mxu0 0.0
    %362 = vmatpush.msra.mxu0 0.0
    %363 = vmatpush.msra.mxu0 0.0
    %364 = vmatpush.msra.mxu0 0.0
    %365 = vmatpush.msra.mxu0 0.0
    %366 = vmatpush.msra.mxu0 %v65
    %367 = vmatpush.msra.mxu0 %v64
    %368 = vmatpush.msra.mxu0 %v63
    %369 = vmatpush.msra.mxu0 %v62
    %370 = vmatmul.f32.gmra.mxu0 %v352
    %v371 = vpop.f32.mrf.mxu0
    %v372 = vadd.f32 0.0, %v371
    %373 = vdwg.mxu0
    %v374 = vadd.f32 %v348, %v372
    %v375 = vxor.u32 %v374, 2147483648
    %v376 = vmul.f32 %v375, 1.442695
    %v377 = vpow.pop %v376
    %v378 = vadd.f32 %v377, 1.0
    %v379 = vrcp.pop %v378
    %v380 = vmul.f32 %v378, %v379
    %v381 = vsub.f32 1.0, %v380
    %v382 = vmul.f32 %v379, %v381
    %v383 = vadd.f32 %v379, %v382
    %vm384 = vweird.f32 %v378
    %vm385 = vweird.f32 %v379
    %vm386 = vmor %vm384, %vm385
    %v387 = vsel %vm386, %v379, %v383
    %v388 = vand.u32 2147483647, %v378
    %vm389 = vcmp.eq.f32.partialorder %v388, 8.507059e+37
    %v390 = vand.u32 %v378, 2147483648
    %v391 = vor.u32 1.1754944e-38, %v390
    %v392 = vsel %vm389, %v391, %v387
    %v393 = vmul.f32 1.0, %v392
    %v394 = vtanh.pop %v374
    %v395 = vmul.f32 %v393, %v340
    %397 = vrot.lane.b32.xlu0 %v394, 64
    %v398 = vpop.permute.xlu0 %397
    %v400 = vmul.f32 %v393, %v398
    %402 = vrot.lane.b32.xlu0 %v400, 32
    %v403 = vpop.permute.xlu0 %402
    %v405 = vadd.f32 %v395, %v403
    %v406 = vtanh.pop %v405
    %408 = vrot.lane.b32.xlu0 %v406, 64
    %v409 = vpop.permute.xlu0 %408
    %v411 = vmul.f32 %v393, %v409
    %s412 = scalar_lea.vmem [#allocation2], 32
    %v413 = vld [vmem:[%s412] sm:$0xff]
    %415 = vrot.lane.b32.xlu0 %v411, 32
    %v416 = vpop.permute.xlu0 %415
    %v417 = vsel %vm155, %v416, 0
    %419 = vmatpush.msra.mxu0 0.0
    %420 = vmatpush.msra.mxu0 0.0
    %421 = vmatpush.msra.mxu0 0.0
    %422 = vmatpush.msra.mxu0 0.0
    %423 = vmatpush.msra.mxu0 0.0
    %424 = vmatpush.msra.mxu0 0.0
    %425 = vmatpush.msra.mxu0 0.0
    %426 = vmatpush.msra.mxu0 0.0
    %427 = vmatpush.msra.mxu0 0.0
    %428 = vmatpush.msra.mxu0 0.0
    %429 = vmatpush.msra.mxu0 0.0
    %430 = vmatpush.msra.mxu0 0.0
    %431 = vmatpush.msra.mxu0 %v65
    %432 = vmatpush.msra.mxu0 %v64
    %433 = vmatpush.msra.mxu0 %v63
    %434 = vmatpush.msra.mxu0 %v62
    %435 = vmatmul.f32.gmra.mxu0 %v417
    %v436 = vpop.f32.mrf.mxu0
    %v437 = vadd.f32 0.0, %v436
    %438 = vdwg.mxu0
    %v439 = vadd.f32 %v413, %v437
    %v440 = vxor.u32 %v439, 2147483648
    %v441 = vmul.f32 %v440, 1.442695
    %v442 = vpow.pop %v441
    %v443 = vadd.f32 %v442, 1.0
    %v444 = vrcp.pop %v443
    %v445 = vmul.f32 %v443, %v444
    %v446 = vsub.f32 1.0, %v445
    %v447 = vmul.f32 %v444, %v446
    %v448 = vadd.f32 %v444, %v447
    %vm449 = vweird.f32 %v443
    %vm450 = vweird.f32 %v444
    %vm451 = vmor %vm449, %vm450
    %v452 = vsel %vm451, %v444, %v448
    %v453 = vand.u32 2147483647, %v443
    %vm454 = vcmp.eq.f32.partialorder %v453, 8.507059e+37
    %v455 = vand.u32 %v443, 2147483648
    %v456 = vor.u32 1.1754944e-38, %v455
    %v457 = vsel %vm454, %v456, %v452
    %v458 = vmul.f32 1.0, %v457
    %v459 = vtanh.pop %v439
    %v460 = vmul.f32 %v458, %v405
    %462 = vrot.lane.b32.xlu0 %v459, 64
    %v463 = vpop.permute.xlu0 %462
    %v465 = vmul.f32 %v458, %v463
    %467 = vrot.lane.b32.xlu0 %v465, 32
    %v468 = vpop.permute.xlu0 %467
    %v470 = vadd.f32 %v460, %v468
    %v471 = vtanh.pop %v470
    %473 = vrot.lane.b32.xlu0 %v471, 64
    %v474 = vpop.permute.xlu0 %473
    %v476 = vmul.f32 %v458, %v474
    %s477 = scalar_lea.vmem [#allocation2], 40
    %v478 = vld [vmem:[%s477] sm:$0xff]
    %480 = vrot.lane.b32.xlu0 %v476, 32
    %v481 = vpop.permute.xlu0 %480
    %v482 = vsel %vm155, %v481, 0
    %484 = vmatpush.msra.mxu0 0.0
    %485 = vmatpush.msra.mxu0 0.0
    %486 = vmatpush.msra.mxu0 0.0
    %487 = vmatpush.msra.mxu0 0.0
    %488 = vmatpush.msra.mxu0 0.0
    %489 = vmatpush.msra.mxu0 0.0
    %490 = vmatpush.msra.mxu0 0.0
    %491 = vmatpush.msra.mxu0 0.0
    %492 = vmatpush.msra.mxu0 0.0
    %493 = vmatpush.msra.mxu0 0.0
    %494 = vmatpush.msra.mxu0 0.0
    %495 = vmatpush.msra.mxu0 0.0
    %496 = vmatpush.msra.mxu0 %v65
    %497 = vmatpush.msra.mxu0 %v64
    %498 = vmatpush.msra.mxu0 %v63
    %499 = vmatpush.msra.mxu0 %v62
    %500 = vmatmul.f32.gmra.mxu0 %v482
    %v501 = vpop.f32.mrf.mxu0
    %v502 = vadd.f32 0.0, %v501
    %503 = vdwg.mxu0
    %v504 = vadd.f32 %v478, %v502
    %v505 = vxor.u32 %v504, 2147483648
    %v506 = vmul.f32 %v505, 1.442695
    %v507 = vpow.pop %v506
    %v508 = vadd.f32 %v507, 1.0
    %v509 = vrcp.pop %v508
    %v510 = vmul.f32 %v508, %v509
    %v511 = vsub.f32 1.0, %v510
    %v512 = vmul.f32 %v509, %v511
    %v513 = vadd.f32 %v509, %v512
    %vm514 = vweird.f32 %v508
    %vm515 = vweird.f32 %v509
    %vm516 = vmor %vm514, %vm515
    %v517 = vsel %vm516, %v509, %v513
    %v518 = vand.u32 2147483647, %v508
    %vm519 = vcmp.eq.f32.partialorder %v518, 8.507059e+37
    %v520 = vand.u32 %v508, 2147483648
    %v521 = vor.u32 1.1754944e-38, %v520
    %v522 = vsel %vm519, %v521, %v517
    %v523 = vmul.f32 1.0, %v522
    %v524 = vtanh.pop %v504
    %v525 = vmul.f32 %v523, %v470
    %527 = vrot.lane.b32.xlu0 %v524, 64
    %v528 = vpop.permute.xlu0 %527
    %v530 = vmul.f32 %v523, %v528
    %532 = vrot.lane.b32.xlu0 %v530, 32
    %v533 = vpop.permute.xlu0 %532
    %v535 = vadd.f32 %v525, %v533
    %v536 = vtanh.pop %v535
    %538 = vrot.lane.b32.xlu0 %v536, 64
    %v539 = vpop.permute.xlu0 %538
    %v541 = vmul.f32 %v523, %v539
    %s542 = scalar_lea.vmem [#allocation2], 48
    %v543 = vld [vmem:[%s542] sm:$0xff]
    %545 = vrot.lane.b32.xlu0 %v541, 32
    %v546 = vpop.permute.xlu0 %545
    %v547 = vsel %vm155, %v546, 0
    %549 = vmatpush.msra.mxu0 0.0
    %550 = vmatpush.msra.mxu0 0.0
    %551 = vmatpush.msra.mxu0 0.0
    %552 = vmatpush.msra.mxu0 0.0
    %553 = vmatpush.msra.mxu0 0.0
    %554 = vmatpush.msra.mxu0 0.0
    %555 = vmatpush.msra.mxu0 0.0
    %556 = vmatpush.msra.mxu0 0.0
    %557 = vmatpush.msra.mxu0 0.0
    %558 = vmatpush.msra.mxu0 0.0
    %559 = vmatpush.msra.mxu0 0.0
    %560 = vmatpush.msra.mxu0 0.0
    %561 = vmatpush.msra.mxu0 %v65
    %562 = vmatpush.msra.mxu0 %v64
    %563 = vmatpush.msra.mxu0 %v63
    %564 = vmatpush.msra.mxu0 %v62
    %565 = vmatmul.f32.gmra.mxu0 %v547
    %v566 = vpop.f32.mrf.mxu0
    %v567 = vadd.f32 0.0, %v566
    %568 = vdwg.mxu0
    %v569 = vadd.f32 %v543, %v567
    %v570 = vxor.u32 %v569, 2147483648
    %v571 = vmul.f32 %v570, 1.442695
    %v572 = vpow.pop %v571
    %v573 = vadd.f32 %v572, 1.0
    %v574 = vrcp.pop %v573
    %v575 = vmul.f32 %v573, %v574
    %v576 = vsub.f32 1.0, %v575
    %v577 = vmul.f32 %v574, %v576
    %v578 = vadd.f32 %v574, %v577
    %vm579 = vweird.f32 %v573
    %vm580 = vweird.f32 %v574
    %vm581 = vmor %vm579, %vm580
    %v582 = vsel %vm581, %v574, %v578
    %v583 = vand.u32 2147483647, %v573
    %vm584 = vcmp.eq.f32.partialorder %v583, 8.507059e+37
    %v585 = vand.u32 %v573, 2147483648
    %v586 = vor.u32 1.1754944e-38, %v585
    %v587 = vsel %vm584, %v586, %v582
    %v588 = vmul.f32 1.0, %v587
    %v589 = vtanh.pop %v569
    %v590 = vmul.f32 %v588, %v535
    %592 = vrot.lane.b32.xlu0 %v589, 64
    %v593 = vpop.permute.xlu0 %592
    %v595 = vmul.f32 %v588, %v593
    %597 = vrot.lane.b32.xlu0 %v595, 32
    %v598 = vpop.permute.xlu0 %597
    %v600 = vadd.f32 %v590, %v598
    %v601 = vtanh.pop %v600
    %603 = vrot.lane.b32.xlu0 %v601, 64
    %v604 = vpop.permute.xlu0 %603
    %v606 = vmul.f32 %v588, %v604
    %s607 = scalar_lea.vmem [#allocation2], 56
    %v608 = vld [vmem:[%s607] sm:$0xff]
    %610 = vrot.lane.b32.xlu0 %v606, 32
    %v611 = vpop.permute.xlu0 %610
    %v612 = vsel %vm155, %v611, 0
    %614 = vmatpush.msra.mxu0 0.0
    %615 = vmatpush.msra.mxu0 0.0
    %616 = vmatpush.msra.mxu0 0.0
    %617 = vmatpush.msra.mxu0 0.0
    %618 = vmatpush.msra.mxu0 0.0
    %619 = vmatpush.msra.mxu0 0.0
    %620 = vmatpush.msra.mxu0 0.0
    %621 = vmatpush.msra.mxu0 0.0
    %622 = vmatpush.msra.mxu0 0.0
    %623 = vmatpush.msra.mxu0 0.0
    %624 = vmatpush.msra.mxu0 0.0
    %625 = vmatpush.msra.mxu0 0.0
    %626 = vmatpush.msra.mxu0 %v65
    %627 = vmatpush.msra.mxu0 %v64
    %628 = vmatpush.msra.mxu0 %v63
    %629 = vmatpush.msra.mxu0 %v62
    %630 = vmatmul.f32.gmra.mxu0 %v612
    %v631 = vpop.f32.mrf.mxu0
    %v632 = vadd.f32 0.0, %v631
    %633 = vdwg.mxu0
    %v634 = vadd.f32 %v608, %v632
    %v635 = vxor.u32 %v634, 2147483648
    %v636 = vmul.f32 %v635, 1.442695
    %v637 = vpow.pop %v636
    %v638 = vadd.f32 %v637, 1.0
    %v639 = vrcp.pop %v638
    %v640 = vmul.f32 %v638, %v639
    %v641 = vsub.f32 1.0, %v640
    %v642 = vmul.f32 %v639, %v641
    %v643 = vadd.f32 %v639, %v642
    %vm644 = vweird.f32 %v638
    %vm645 = vweird.f32 %v639
    %vm646 = vmor %vm644, %vm645
    %v647 = vsel %vm646, %v639, %v643
    %v648 = vand.u32 2147483647, %v638
    %vm649 = vcmp.eq.f32.partialorder %v648, 8.507059e+37
    %v650 = vand.u32 %v638, 2147483648
    %v651 = vor.u32 1.1754944e-38, %v650
    %v652 = vsel %vm649, %v651, %v647
    %v653 = vmul.f32 1.0, %v652
    %v654 = vtanh.pop %v634
    %v655 = vmul.f32 %v653, %v600
    %657 = vrot.lane.b32.xlu0 %v654, 64
    %v658 = vpop.permute.xlu0 %657
    %v660 = vmul.f32 %v653, %v658
    %662 = vrot.lane.b32.xlu0 %v660, 32
    %v663 = vpop.permute.xlu0 %662
    %v665 = vadd.f32 %v655, %v663
    %v666 = vtanh.pop %v665
    %668 = vrot.lane.b32.xlu0 %v666, 64
    %v669 = vpop.permute.xlu0 %668
    %v671 = vmul.f32 %v653, %v669
    %v672 = vld [vmem:[%s0 + $0x38] sm:$0xff]
    %v673 = vld [vmem:[#allocation6] sm:$0xff]
    %v674 = vld [vmem:[#allocation6 + $0x8] sm:$0xff]
    %v675 = vld [vmem:[%s5] sm:$0x1]
    %v677 = vperm.slane %v675, 0
    %v680 = vsel %vm80, %v672, 0
    %682 = vmatpush.msra.mxu0 0.0
    %683 = vmatpush.msra.mxu0 0.0
    %684 = vmatpush.msra.mxu0 0.0
    %685 = vmatpush.msra.mxu0 0.0
    %686 = vmatpush.msra.mxu0 0.0
    %687 = vmatpush.msra.mxu0 0.0
    %688 = vmatpush.msra.mxu0 0.0
    %689 = vmatpush.msra.mxu0 0.0
    %690 = vmatpush.msra.mxu0 0.0
    %691 = vmatpush.msra.mxu0 0.0
    %692 = vmatpush.msra.mxu0 0.0
    %693 = vmatpush.msra.mxu0 0.0
    %694 = vmatpush.msra.mxu0 0.0
    %695 = vmatpush.msra.mxu0 0.0
    %696 = vmatpush.msra.mxu0 %v674
    %697 = vmatpush.msra.mxu0 %v673
    %698 = vmatmul.f32.gmra.mxu0 %v680
    %v699 = vpop.f32.mrf.mxu0
    %v700 = vadd.f32 %v677, %v699
    %701 = vdwg.mxu0
    %v702 = vxor.u32 %v700, 2147483648
    %v703 = vmul.f32 %v702, 1.442695
    %v704 = vpow.pop %v703
    %v705 = vadd.f32 %v704, 1.0
    %v706 = vrcp.pop %v705
    %v707 = vmul.f32 %v705, %v706
    %v708 = vsub.f32 1.0, %v707
    %v709 = vmul.f32 %v706, %v708
    %v710 = vadd.f32 %v706, %v709
    %vm711 = vweird.f32 %v705
    %vm712 = vweird.f32 %v706
    %vm713 = vmor %vm711, %vm712
    %v714 = vsel %vm713, %v706, %v710
    %v715 = vand.u32 2147483647, %v705
    %vm716 = vcmp.eq.f32.partialorder %v715, 8.507059e+37
    %v717 = vand.u32 %v705, 2147483648
    %v718 = vor.u32 1.1754944e-38, %v717
    %v719 = vsel %vm716, %v718, %v714
    %v720 = vmul.f32 1.0, %v719
    %v721 = vtanh.pop %v700
    %723 = vrot.lane.b32.xlu0 %v721, 64
    %v724 = vpop.permute.xlu0 %723
    %v726 = vmul.f32 %v720, %v724
    %v727 = vtanh.pop %v726
    %729 = vrot.lane.b32.xlu0 %v727, 96
    %v730 = vpop.permute.xlu0 %729
    %v732 = vmul.f32 %v720, %v730
    %v733 = vld [vmem:[%s6] sm:$0xff]
    %v734 = vld [vmem:[%s6 + $0x8] sm:$0xff]
    %v735 = vld [vmem:[%s6 + $0x10] sm:$0xff]
    %v736 = vld [vmem:[%s6 + $0x18] sm:$0xff]
    %v737 = vld [vmem:[%s6 + $0x20] sm:$0xff]
    %v738 = vld [vmem:[%s6 + $0x28] sm:$0xff]
    %v739 = vld [vmem:[%s6 + $0x30] sm:$0xff]
    %v740 = vld [vmem:[%s6 + $0x38] sm:$0xff]
    %742 = vrot.lane.b32.xlu0 %v732, 32
    %v743 = vpop.permute.xlu0 %742
    %v744 = vsel %vm155, %v743, 0
    %746 = vmatpush.msra.mxu0 0.0
    %747 = vmatpush.msra.mxu0 0.0
    %748 = vmatpush.msra.mxu0 0.0
    %749 = vmatpush.msra.mxu0 0.0
    %750 = vmatpush.msra.mxu0 0.0
    %751 = vmatpush.msra.mxu0 0.0
    %752 = vmatpush.msra.mxu0 0.0
    %753 = vmatpush.msra.mxu0 0.0
    %754 = vmatpush.msra.mxu0 0.0
    %755 = vmatpush.msra.mxu0 0.0
    %756 = vmatpush.msra.mxu0 0.0
    %757 = vmatpush.msra.mxu0 0.0
    %758 = vmatpush.msra.mxu0 %v740
    %759 = vmatpush.msra.mxu0 %v739
    %760 = vmatpush.msra.mxu0 %v738
    %761 = vmatpush.msra.mxu0 %v737
    %762 = vmatmul.f32.gmra.mxu0 %v744
    %v763 = vpop.f32.mrf.mxu0
    %v764 = vadd.f32 0.0, %v763
    %765 = vdwg.mxu0
    %767 = vrot.lane.b32.xlu0 %v671, 32
    %v768 = vpop.permute.xlu0 %767
    %v769 = vsel %vm155, %v768, 0
    %771 = vmatpush.msra.mxu0 0.0
    %772 = vmatpush.msra.mxu0 0.0
    %773 = vmatpush.msra.mxu0 0.0
    %774 = vmatpush.msra.mxu0 0.0
    %775 = vmatpush.msra.mxu0 0.0
    %776 = vmatpush.msra.mxu0 0.0
    %777 = vmatpush.msra.mxu0 0.0
    %778 = vmatpush.msra.mxu0 0.0
    %779 = vmatpush.msra.mxu0 0.0
    %780 = vmatpush.msra.mxu0 0.0
    %781 = vmatpush.msra.mxu0 0.0
    %782 = vmatpush.msra.mxu0 0.0
    %783 = vmatpush.msra.mxu0 %v736
    %784 = vmatpush.msra.mxu0 %v735
    %785 = vmatpush.msra.mxu0 %v734
    %786 = vmatpush.msra.mxu0 %v733
    %787 = vmatmul.f32.gmra.mxu0 %v769
    %v788 = vpop.f32.mrf.mxu0
    %v789 = vadd.f32 %v764, %v788
    %790 = vdwg.mxu0
    %v791 = vld [vmem:[%s7] sm:$0x1]
    %v793 = vperm.slane %v791, 0
    %v795 = vadd.f32 %v789, %v793
    %796 = vst [vmem:[#allocation8] sm:$0xff] %v795
    // Predicated region
    $region42: #{tpu_custom_call.1} parent=1 // pred_check
      _
    $region43: #{tpu_custom_call.1} parent=1 // pred_check_branch
      %798 = sbr.rel (0) target = $region45
    $region44: #{tpu_custom_call.1} parent=1 // pred_region
      %800 = vsyncadd [#allocation5], 0
      %s802 = sshll.u32 [#allocation8], 4
      %s803 = int_to_ptr.vmem [resolvable:$true] %s802
      %s804 = sshll.u32 %s8, 4
      %s805 = int_to_ptr.hbm [resolvable:$true] %s804
      %807 = dma.vmem_to_hbm [thread:$0]  %s803, 128, %s805, [#allocation5]
    $region45: #{tpu_custom_call.1} parent=1 // pred_fallthru
      _
    // Predicated region
    $region46: #{tpu_custom_call.1} parent=1 // pred_check
      _
    $region47: #{tpu_custom_call.1} parent=1 // pred_check_branch
      %809 = sbr.rel (0) target = $region49
    $region48: #{tpu_custom_call.1} parent=1 // pred_region
      %811 = dma.done [#allocation5], 128
    $region49: #{tpu_custom_call.1} parent=1 // pred_fallthru
      _
    %812 = vsyncpa [#allocation4], 1
    %813 = vsyncpa [#allocation7], 1
    %814 = vsyncpa [#allocation5], 1

</llo_original>
